<compile_context>
chip_gen: v6e
topology: v6e:2x2x1
jax: 0.10.0
libtpu: 0.0.40
codegen_flags: <defaults>
</compile_context>

<pallas_src>
import functools

import jax
import jax.numpy as jnp
from jax import lax
from jax.experimental import pallas as pl
from jax.experimental.pallas import tpu as pltpu

_LANES = 128
_SUBLANES = 8
_CHUNK_ROWS = 128                 # rows per inner accumulation step (16 vregs / input, f32)
_DEFAULT_BLOCK_ROWS = 2048        # 1 MiB f32 per input per pipeline buffer
_NUM_SPLITS = 2                   # leading "parallel" axis → both TensorCores on v7x


def _row0_to_tile(v):
    """(1, 128) f32 -> (8, 128) f32 with the data in sublane 0, zeros elsewhere."""
    sub = lax.broadcasted_iota(jnp.int32, (_SUBLANES, _LANES), 0)
    return jnp.where(sub == 0,
                     jnp.broadcast_to(v, (_SUBLANES, _LANES)),
                     jnp.zeros((_SUBLANES, _LANES), v.dtype))


def _iou_partial_kernel(x_ref, t_ref, acc_i_ref, acc_t_ref, *,
                        rows_total, block_rows, chunk_rows, tiles_per_split):
    """Accumulate per-split partial sums of (x*t) and (x+t) into (8,128) f32 outputs.

    x_ref / t_ref : (block_rows, 128) input tiles (any dtype; cast to f32 here).
    acc_i_ref     : (1, 8, 128) f32 running partial of the intersection sum.
    acc_t_ref     : (1, 8, 128) f32 running partial of the (inputs + targets) sum.
    """
    c = pl.program_id(0)          # split ("parallel") index
    i = pl.program_id(1)          # block index within the split ("arbitrary")

    @pl.when(i == 0)
    def _init():
        acc_i_ref[...] = jnp.zeros_like(acc_i_ref)
        acc_t_ref[...] = jnp.zeros_like(acc_t_ref)

    # Global row of this block's first row, UNclamped: identifies both the
    # ragged last block and the fully-masked padding steps of an uneven split
    # (whose DMA index is clamped in the index_map but must contribute zero).
    start_row = (c * tiles_per_split + i) * block_rows
    n_valid = jnp.clip(rows_total - start_row, 0, block_rows)

    n_chunks = block_rows // chunk_rows            # static
    rem_rows = block_rows - n_chunks * chunk_rows  # static

    def accumulate(masked):
        def chunk_partial(off, rows, row_iota):
            x = x_ref[pl.ds(off, rows), :].astype(jnp.float32)
            t = t_ref[pl.ds(off, rows), :].astype(jnp.float32)
            if masked:
                keep = row_iota < (n_valid - off)
                x = jnp.where(keep, x, 0.0)
                t = jnp.where(keep, t, 0.0)
            if rows % _SUBLANES == 0:
                # Pure vreg-wise VPU adds down to one (8,128) tile.
                pi = jnp.sum((x * t).reshape(-1, _SUBLANES, _LANES), axis=0)
                pt = jnp.sum((x + t).reshape(-1, _SUBLANES, _LANES), axis=0)
            else:
                pi = _row0_to_tile(jnp.sum(x * t, axis=0, keepdims=True))
                pt = _row0_to_tile(jnp.sum(x + t, axis=0, keepdims=True))
            return pi, pt

        zeros = jnp.zeros((_SUBLANES, _LANES), jnp.float32)
        ai, at = zeros, zeros

        if n_chunks > 0:
            base_iota = (lax.broadcasted_iota(jnp.int32, (chunk_rows, _LANES), 0)
                         if masked else None)

            def body(k, carry):
                a_i, a_t = carry
                off = pl.multiple_of(k * chunk_rows, chunk_rows)
                pi, pt = chunk_partial(off, chunk_rows, base_iota)
                return a_i + pi, a_t + pt

            ai, at = lax.fori_loop(0, n_chunks, body, (ai, at), unroll=True)

        if rem_rows > 0:                            # static remainder chunk
            off = n_chunks * chunk_rows
            rem_iota = (lax.broadcasted_iota(jnp.int32, (rem_rows, _LANES), 0)
                        if masked else None)
            pi, pt = chunk_partial(off, rem_rows, rem_iota)
            ai, at = ai + pi, at + pt

        acc_i_ref[0] += ai
        acc_t_ref[0] += at

    block_full = n_valid == block_rows

    @pl.when(block_full)            # hot path: no masking cost
    def _fast():
        accumulate(masked=False)

    @pl.when(jnp.logical_not(block_full))   # cold path: ragged / padded block
    def _ragged():
        accumulate(masked=True)


def iou_loss(inputs, targets, eps=1.0, *, block_rows=_DEFAULT_BLOCK_ROWS):
    """Pallas equivalent of IoULoss(eps).forward(inputs, targets)."""
    assert inputs.shape == targets.shape, "inputs/targets must have the same shape"
    n = inputs.size
    x = inputs.reshape(-1)
    t = targets.reshape(-1)

    rem = n % _LANES
    if rem:
        # TODO(synk): a fully copy-free path for sizes not divisible by 128 lanes
        # would need a manual-DMA 1-D kernel; this pad is <=127 elements but costs
        # one extra pass over the inputs in HBM.  Zero padding is exact for IoU.
        pad = _LANES - rem
        x = jnp.pad(x, (0, pad))
        t = jnp.pad(t, (0, pad))

    rows = x.size // _LANES
    x2 = x.reshape(rows, _LANES)   # free (bitcast) reshape; dense for any dtype
    t2 = t.reshape(rows, _LANES)

    if rows <= block_rows:
        block_rows = rows          # single full-extent block (always layout-legal)
    else:
        block_rows = max(_SUBLANES, (block_rows // _SUBLANES) * _SUBLANES)

    num_blocks = pl.cdiv(rows, block_rows)
    num_splits = _NUM_SPLITS if num_blocks >= _NUM_SPLITS else 1
    tiles_per_split = pl.cdiv(num_blocks, num_splits)

    def in_index_map(c, i):
        # Clamp so padding steps of an uneven split issue an in-bounds DMA;
        # their contribution is masked to zero inside the kernel.
        return (jnp.minimum(c * tiles_per_split + i, num_blocks - 1), 0)

    kernel = functools.partial(
        _iou_partial_kernel,
        rows_total=rows, block_rows=block_rows,
        chunk_rows=_CHUNK_ROWS, tiles_per_split=tiles_per_split)

    itemsize = jnp.dtype(x2.dtype).itemsize
    cost = pl.CostEstimate(
        flops=3 * rows * _LANES,
        transcendentals=0,
        bytes_accessed=2 * rows * _LANES * itemsize
        + 2 * num_splits * _SUBLANES * _LANES * 4)

    acc_i, acc_t = pl.pallas_call(
        kernel,
        out_shape=(
            jax.ShapeDtypeStruct((num_splits, _SUBLANES, _LANES), jnp.float32),
            jax.ShapeDtypeStruct((num_splits, _SUBLANES, _LANES), jnp.float32),
        ),
        grid_spec=pltpu.PrefetchScalarGridSpec(
            num_scalar_prefetch=0,
            grid=(num_splits, tiles_per_split),
            in_specs=[
                pl.BlockSpec((block_rows, _LANES), in_index_map),
                pl.BlockSpec((block_rows, _LANES), in_index_map),
            ],
            out_specs=[
                pl.BlockSpec((1, _SUBLANES, _LANES), lambda c, i: (c, 0, 0)),
                pl.BlockSpec((1, _SUBLANES, _LANES), lambda c, i: (c, 0, 0)),
            ],
        ),
        compiler_params=pltpu.CompilerParams(
            dimension_semantics=("parallel", "arbitrary"),
            vmem_limit_bytes=32 * 1024 * 1024),
        cost_estimate=cost,
    )(x2, t2)

    # Tiny final reduce + IoU scalar math (moved out of the kernel).
    inter = jnp.sum(acc_i)
    total = jnp.sum(acc_t)
    union = total - inter
    return 1.0 - (inter + eps) / (union + eps)


def _reference(inputs, targets, eps=1.0):
    x = inputs.astype(jnp.float32)
    t = targets.astype(jnp.float32)
    inter = jnp.sum(x * t)
    total = jnp.sum(x + t)
    return 1.0 - (inter + eps) / (total - inter + eps)


if __name__ == "__main__":
    key = jax.random.PRNGKey(0)
    k1, k2, k3, k4, k5, k6 = jax.random.split(key, 6)

    # Main example: NCHW sigmoid probabilities vs. binary masks, as the module implies.
    shape = (2, 4, 16, 16)
    inputs = jax.random.uniform(k1, shape, dtype=jnp.float32)
    targets = (jax.random.uniform(k2, shape) > 0.5).astype(jnp.float32)
    loss = jax.block_until_ready(iou_loss(inputs, targets))
    ref = _reference(inputs, targets)
    assert jnp.allclose(loss, ref, rtol=1e-5, atol=1e-5), (loss, ref)

    # Ragged tiling: 72 rows of 128 lanes with 32-row blocks → a partial last
    # block (in-kernel mask) and an uneven 2-way split (one fully-masked step).
    shape2 = (1, 1, 72, 128)
    inputs2 = jax.random.uniform(k3, shape2, dtype=jnp.float32)
    targets2 = (jax.random.uniform(k4, shape2) > 0.5).astype(jnp.float32)
    loss2 = jax.block_until_ready(iou_loss(inputs2, targets2, block_rows=32))
    ref2 = _reference(inputs2, targets2)
    assert jnp.allclose(loss2, ref2, rtol=1e-5, atol=1e-5), (loss2, ref2)

    # Flattened size not a multiple of 128 lanes (exercises the <128-elem pad fallback).
    shape3 = (3, 5, 17, 13)
    inputs3 = jax.random.uniform(k5, shape3, dtype=jnp.float32)
    targets3 = (jax.random.uniform(k6, shape3) > 0.5).astype(jnp.float32)
    loss3 = jax.block_until_ready(iou_loss(inputs3, targets3))
    ref3 = _reference(inputs3, targets3)
    assert jnp.allclose(loss3, ref3, rtol=1e-5, atol=1e-5), (loss3, ref3)

    # bf16 streaming path (halves HBM read traffic; accumulation stays f32 in-kernel).
    loss_bf16 = jax.block_until_ready(
        iou_loss(inputs.astype(jnp.bfloat16), targets.astype(jnp.bfloat16)))
    assert jnp.allclose(loss_bf16, ref, rtol=2e-2, atol=2e-2), (loss_bf16, ref)

    print("KERNEL_OK")
</pallas_src>

<mosaic_0001>
module attributes {stable_mosaic.version = 11 : i64} {
  func.func @_iou_partial_kernel(%arg0: i32, %arg1: i32, %arg2: memref<16x128xf32, #tpu.memory_space<vmem>>, %arg3: memref<16x128xf32, #tpu.memory_space<vmem>>, %arg4: memref<1x8x128xf32, #tpu.memory_space<vmem>>, %arg5: memref<1x8x128xf32, #tpu.memory_space<vmem>>) attributes {dimension_semantics = [#tpu.dimension_semantics<parallel>, #tpu.dimension_semantics<arbitrary>], iteration_bounds = array<i64: 1, 1>, scalar_prefetch = 0 : i64, scratch_operands = 0 : i64, tpu.core_type = #tpu.core_type<tc>, window_params = [{transform_indices = @transform_0, window_bounds = array<i64: 16, 128>}, {transform_indices = @transform_1, window_bounds = array<i64: 16, 128>}, {transform_indices = @transform_2, window_bounds = array<i64: 1, 8, 128>}, {transform_indices = @transform_3, window_bounds = array<i64: 1, 8, 128>}]} {
    %c0_i32 = arith.constant 0 : i32
    %0 = arith.cmpi eq, %arg1, %c0_i32 : i32
    %1 = arith.extui %0 : i1 to i32
    %c0_i32_0 = arith.constant 0 : i32
    %2 = arith.cmpi ne, %1, %c0_i32_0 : i32
    scf.if %2 {
      %cst = arith.constant 0.000000e+00 : f32
      %15 = vector.broadcast %cst : f32 to vector<1x8x128xf32>
      %c0 = arith.constant 0 : index
      %c0_7 = arith.constant 0 : index
      %c0_8 = arith.constant 0 : index
      %16 = vector.load %arg4[%c0, %c0_7, %c0_8] : memref<1x8x128xf32, #tpu.memory_space<vmem>>, vector<1x8x128xf32>
      tpu.vector_store %arg4[%c0, %c0_7, %c0_8], %15 {strides = array<i32>} : memref<1x8x128xf32, #tpu.memory_space<vmem>>, vector<1x8x128xf32>,
      %cst_9 = arith.constant 0.000000e+00 : f32
      %17 = vector.broadcast %cst_9 : f32 to vector<1x8x128xf32>
      %c0_10 = arith.constant 0 : index
      %c0_11 = arith.constant 0 : index
      %c0_12 = arith.constant 0 : index
      %18 = vector.load %arg5[%c0_10, %c0_11, %c0_12] : memref<1x8x128xf32, #tpu.memory_space<vmem>>, vector<1x8x128xf32>
      tpu.vector_store %arg5[%c0_10, %c0_11, %c0_12], %17 {strides = array<i32>} : memref<1x8x128xf32, #tpu.memory_space<vmem>>, vector<1x8x128xf32>,
    } else {
    }
    %c1_i32 = arith.constant 1 : i32
    %3 = arith.muli %arg0, %c1_i32 : i32
    %4 = arith.addi %3, %arg1 : i32
    %c16_i32 = arith.constant 16 : i32
    %5 = arith.muli %4, %c16_i32 : i32
    %c16_i32_1 = arith.constant 16 : i32
    %6 = arith.subi %c16_i32_1, %5 : i32
    %c0_i32_2 = arith.constant 0 : i32
    %c16_i32_3 = arith.constant 16 : i32
    %7 = arith.maxsi %c0_i32_2, %6 : i32
    %8 = arith.minsi %c16_i32_3, %7 : i32
    %c16_i32_4 = arith.constant 16 : i32
    %9 = arith.cmpi eq, %8, %c16_i32_4 : i32
    %10 = arith.extui %9 : i1 to i32
    %c0_i32_5 = arith.constant 0 : i32
    %11 = arith.cmpi ne, %10, %c0_i32_5 : i32
    scf.if %11 {
      %cst = arith.constant 0.000000e+00 : f32
      %15 = vector.broadcast %cst : f32 to vector<8x128xf32>
      %c0 = arith.constant 0 : index
      %c0_7 = arith.constant 0 : index
      %16 = vector.load %arg2[%c0, %c0_7] : memref<16x128xf32, #tpu.memory_space<vmem>>, vector<16x128xf32>
      %c0_8 = arith.constant 0 : index
      %c0_9 = arith.constant 0 : index
      %17 = vector.load %arg3[%c0_8, %c0_9] : memref<16x128xf32, #tpu.memory_space<vmem>>, vector<16x128xf32>
      %18 = arith.mulf %16, %17 : vector<16x128xf32>
      %19 = vector.shape_cast %18 : vector<16x128xf32> to vector<2x8x128xf32>
      %cst_10 = arith.constant dense<0.000000e+00> : vector<8x128xf32>
      %20 = vector.multi_reduction <add>, %19, %cst_10 [0] : vector<2x8x128xf32> to vector<8x128xf32>
      %21 = arith.addf %16, %17 : vector<16x128xf32>
      %22 = vector.shape_cast %21 : vector<16x128xf32> to vector<2x8x128xf32>
      %cst_11 = arith.constant dense<0.000000e+00> : vector<8x128xf32>
      %23 = vector.multi_reduction <add>, %22, %cst_11 [0] : vector<2x8x128xf32> to vector<8x128xf32>
      %24 = arith.addf %15, %20 : vector<8x128xf32>
      %25 = arith.addf %15, %23 : vector<8x128xf32>
      %c0_12 = arith.constant 0 : index
      %c0_13 = arith.constant 0 : index
      %c0_14 = arith.constant 0 : index
      %26 = vector.load %arg4[%c0_12, %c0_13, %c0_14] : memref<1x8x128xf32, #tpu.memory_space<vmem>>, vector<1x8x128xf32>
      %27 = vector.shape_cast %26 : vector<1x8x128xf32> to vector<8x128xf32>
      %28 = arith.addf %27, %24 : vector<8x128xf32>
      %c0_15 = arith.constant 0 : index
      %c0_16 = arith.constant 0 : index
      %c0_17 = arith.constant 0 : index
      %29 = vector.load %arg4[%c0_15, %c0_16, %c0_17] : memref<1x8x128xf32, #tpu.memory_space<vmem>>, vector<1x8x128xf32>
      %30 = vector.shape_cast %29 : vector<1x8x128xf32> to vector<8x128xf32>
      %31 = vector.shape_cast %28 : vector<8x128xf32> to vector<1x8x128xf32>
      tpu.vector_store %arg4[%c0_15, %c0_16, %c0_17], %31 {strides = array<i32>} : memref<1x8x128xf32, #tpu.memory_space<vmem>>, vector<1x8x128xf32>,
      %c0_18 = arith.constant 0 : index
      %c0_19 = arith.constant 0 : index
      %c0_20 = arith.constant 0 : index
      %32 = vector.load %arg5[%c0_18, %c0_19, %c0_20] : memref<1x8x128xf32, #tpu.memory_space<vmem>>, vector<1x8x128xf32>
      %33 = vector.shape_cast %32 : vector<1x8x128xf32> to vector<8x128xf32>
      %34 = arith.addf %33, %25 : vector<8x128xf32>
      %c0_21 = arith.constant 0 : index
      %c0_22 = arith.constant 0 : index
      %c0_23 = arith.constant 0 : index
      %35 = vector.load %arg5[%c0_21, %c0_22, %c0_23] : memref<1x8x128xf32, #tpu.memory_space<vmem>>, vector<1x8x128xf32>
      %36 = vector.shape_cast %35 : vector<1x8x128xf32> to vector<8x128xf32>
      %37 = vector.shape_cast %34 : vector<8x128xf32> to vector<1x8x128xf32>
      tpu.vector_store %arg5[%c0_21, %c0_22, %c0_23], %37 {strides = array<i32>} : memref<1x8x128xf32, #tpu.memory_space<vmem>>, vector<1x8x128xf32>,
    } else {
    }
    %true = arith.constant true
    %12 = arith.xori %9, %true : i1
    %13 = arith.extui %12 : i1 to i32
    %c0_i32_6 = arith.constant 0 : i32
    %14 = arith.cmpi ne, %13, %c0_i32_6 : i32
    scf.if %14 {
      %cst = arith.constant 0.000000e+00 : f32
      %15 = vector.broadcast %cst : f32 to vector<8x128xf32>
      %16 = tpu.iota {dimensions = array<i32: 0>} : vector<16x128xi32>
      %c0 = arith.constant 0 : index
      %c0_7 = arith.constant 0 : index
      %17 = vector.load %arg2[%c0, %c0_7] : memref<16x128xf32, #tpu.memory_space<vmem>>, vector<16x128xf32>
      %c0_8 = arith.constant 0 : index
      %c0_9 = arith.constant 0 : index
      %18 = vector.load %arg3[%c0_8, %c0_9] : memref<16x128xf32, #tpu.memory_space<vmem>>, vector<16x128xf32>
      %c0_i32_10 = arith.constant 0 : i32
      %19 = arith.subi %8, %c0_i32_10 : i32
      %20 = vector.broadcast %19 : i32 to vector<16x128xi32>
      %21 = arith.cmpi slt, %16, %20 : vector<16x128xi32>
      %cst_11 = arith.constant 0.000000e+00 : f32
      %22 = vector.broadcast %cst_11 : f32 to vector<16x128xf32>
      %23 = arith.select %21, %17, %22 : vector<16x128xi1>, vector<16x128xf32>
      %cst_12 = arith.constant 0.000000e+00 : f32
      %24 = vector.broadcast %cst_12 : f32 to vector<16x128xf32>
      %25 = arith.select %21, %18, %24 : vector<16x128xi1>, vector<16x128xf32>
      %26 = arith.mulf %23, %25 : vector<16x128xf32>
      %27 = vector.shape_cast %26 : vector<16x128xf32> to vector<2x8x128xf32>
      %cst_13 = arith.constant dense<0.000000e+00> : vector<8x128xf32>
      %28 = vector.multi_reduction <add>, %27, %cst_13 [0] : vector<2x8x128xf32> to vector<8x128xf32>
      %29 = arith.addf %23, %25 : vector<16x128xf32>
      %30 = vector.shape_cast %29 : vector<16x128xf32> to vector<2x8x128xf32>
      %cst_14 = arith.constant dense<0.000000e+00> : vector<8x128xf32>
      %31 = vector.multi_reduction <add>, %30, %cst_14 [0] : vector<2x8x128xf32> to vector<8x128xf32>
      %32 = arith.addf %15, %28 : vector<8x128xf32>
      %33 = arith.addf %15, %31 : vector<8x128xf32>
      %c0_15 = arith.constant 0 : index
      %c0_16 = arith.constant 0 : index
      %c0_17 = arith.constant 0 : index
      %34 = vector.load %arg4[%c0_15, %c0_16, %c0_17] : memref<1x8x128xf32, #tpu.memory_space<vmem>>, vector<1x8x128xf32>
      %35 = vector.shape_cast %34 : vector<1x8x128xf32> to vector<8x128xf32>
      %36 = arith.addf %35, %32 : vector<8x128xf32>
      %c0_18 = arith.constant 0 : index
      %c0_19 = arith.constant 0 : index
      %c0_20 = arith.constant 0 : index
      %37 = vector.load %arg4[%c0_18, %c0_19, %c0_20] : memref<1x8x128xf32, #tpu.memory_space<vmem>>, vector<1x8x128xf32>
      %38 = vector.shape_cast %37 : vector<1x8x128xf32> to vector<8x128xf32>
      %39 = vector.shape_cast %36 : vector<8x128xf32> to vector<1x8x128xf32>
      tpu.vector_store %arg4[%c0_18, %c0_19, %c0_20], %39 {strides = array<i32>} : memref<1x8x128xf32, #tpu.memory_space<vmem>>, vector<1x8x128xf32>,
      %c0_21 = arith.constant 0 : index
      %c0_22 = arith.constant 0 : index
      %c0_23 = arith.constant 0 : index
      %40 = vector.load %arg5[%c0_21, %c0_22, %c0_23] : memref<1x8x128xf32, #tpu.memory_space<vmem>>, vector<1x8x128xf32>
      %41 = vector.shape_cast %40 : vector<1x8x128xf32> to vector<8x128xf32>
      %42 = arith.addf %41, %33 : vector<8x128xf32>
      %c0_24 = arith.constant 0 : index
      %c0_25 = arith.constant 0 : index
      %c0_26 = arith.constant 0 : index
      %43 = vector.load %arg5[%c0_24, %c0_25, %c0_26] : memref<1x8x128xf32, #tpu.memory_space<vmem>>, vector<1x8x128xf32>
      %44 = vector.shape_cast %43 : vector<1x8x128xf32> to vector<8x128xf32>
      %45 = vector.shape_cast %42 : vector<8x128xf32> to vector<1x8x128xf32>
      tpu.vector_store %arg5[%c0_24, %c0_25, %c0_26], %45 {strides = array<i32>} : memref<1x8x128xf32, #tpu.memory_space<vmem>>, vector<1x8x128xf32>,
    } else {
    }
    return
  }
  func.func @transform_0(%arg0: i32, %arg1: i32) -> (i32, i32) {
    %c1_i32 = arith.constant 1 : i32
    %0 = arith.muli %arg0, %c1_i32 : i32
    %1 = arith.addi %0, %arg1 : i32
    %c0_i32 = arith.constant 0 : i32
    %2 = arith.minsi %1, %c0_i32 : i32
    %c0_i32_0 = arith.constant 0 : i32
    %c0_i32_1 = arith.constant 0 : i32
    return %2, %c0_i32_0 : i32, i32
  }
  func.func @transform_1(%arg0: i32, %arg1: i32) -> (i32, i32) {
    %c1_i32 = arith.constant 1 : i32
    %0 = arith.muli %arg0, %c1_i32 : i32
    %1 = arith.addi %0, %arg1 : i32
    %c0_i32 = arith.constant 0 : i32
    %2 = arith.minsi %1, %c0_i32 : i32
    %c0_i32_0 = arith.constant 0 : i32
    %c0_i32_1 = arith.constant 0 : i32
    return %2, %c0_i32_0 : i32, i32
  }
  func.func @transform_2(%arg0: i32, %arg1: i32) -> (i32, i32, i32) {
    %c0_i32 = arith.constant 0 : i32
    %c0_i32_0 = arith.constant 0 : i32
    %c0_i32_1 = arith.constant 0 : i32
    return %arg0, %c0_i32, %c0_i32_0 : i32, i32, i32
  }
  func.func @transform_3(%arg0: i32, %arg1: i32) -> (i32, i32, i32) {
    %c0_i32 = arith.constant 0 : i32
    %c0_i32_0 = arith.constant 0 : i32
    %c0_i32_1 = arith.constant 0 : i32
    return %arg0, %c0_i32, %c0_i32_0 : i32, i32, i32
  }
}

</mosaic_0001>

<llo_original>
// kernel: tpu_custom_call.1
$region0: #{tpu_custom_call.1}
  #allocation0 [shape = 'u32[]', space=smem, size = 0x4, offset = 0x4, fixed_abs, tag = 'smem constant byte address 0x4 - core index']
  #allocation1 [shape = 'u32[144,128]{1,0:T(1,128)}', space=vmem, size = 0x12000, scoped, tag = 'internal scratch']
  %s0 = inlined_call_operand.hbm [shape: f32[16,128], index: 0, kind: input, shape index: {}]
  %s1 = inlined_call_operand.hbm [shape: f32[16,128], index: 1, kind: input, shape index: {}]
  %s2 = inlined_call_operand.hbm [shape: f32[1,8,128], index: 2, kind: output, shape index: {0}]
  %s3 = inlined_call_operand.hbm [shape: f32[1,8,128], index: 3, kind: output, shape index: {1}]
  %4 = xla_tuple %s2, %s3
  %s5 = sld [smem:[#allocation0]]
  $region46: #{tpu_custom_call.1} parent=0
    _
  %s7 = ssub.s32 1, %s5
  %s8 = scalar_select 0, %s7, %s5
  $region1: #{tpu_custom_call.1} parent=0
    #allocation2 [shape = 'u8[8192]{0}', space=vmem, size = 0x2000, scoped, tag = 'input window, operand 0, single buffered']
    #allocation3 [shape = 's32[1]{0}', space=sflag, size = 0x4, scoped, tag = 'scoped memory for tpu_custom_call.1']
    #allocation4 [shape = 's32[1]{0}', space=sflag, size = 0x4, scoped, tag = 'scoped memory for tpu_custom_call.1']
    #allocation5 [shape = 'u8[8192]{0}', space=vmem, size = 0x2000, scoped, tag = 'input window, operand 1, single buffered']
    #allocation6 [shape = 's32[1]{0}', space=sflag, size = 0x4, scoped, tag = 'scoped memory for tpu_custom_call.1']
    #allocation7 [shape = 'u8[4096]{0}', space=vmem, size = 0x1000, scoped, tag = 'output window, operand 0, single buffered']
    #allocation8 [shape = 'u8[4096]{0}', space=vmem, size = 0x1000, scoped, tag = 'output window, operand 1, single buffered']
    #allocation9 [shape = 's32[1]{0}', space=sflag, size = 0x4, scoped, tag = 'scoped memory for tpu_custom_call.1']
    %9 = vsyncpa [#allocation3], 0
    %10 = vsyncpa [#allocation6], 0
    %11 = vsyncpa [#allocation4], 0
    %12 = vsyncpa [#allocation9], 0
    // Predicated region
    $region2: #{tpu_custom_call.1} parent=1 // pred_check
      _
    $region3: #{tpu_custom_call.1} parent=1 // pred_check_branch
      %14 = sbr.rel (0) target = $region5
    $region4: #{tpu_custom_call.1} parent=1 // pred_region
      %s15 = sadd.s32 0, 0
      %p16 = scmp.lt.s32.totalorder %s15, 0
      %s17 = scalar_select %p16, %s15, 0
      %s18 = smul.u32 2, %s17
      %s20 = ssub.s32 256, 256
      %21 = vsyncadd [#allocation3], %s20
      %s22 = smul.addr %s18, 128
      %s23 = scalar_lea.hbm %s0, %s22
      %s24 = sshll.u32 [#allocation2], 4
      %s25 = int_to_ptr.vmem [resolvable:$true] %s24
      %30 = dma.hbm_to_vmem [thread:$0]  %s23, 256, %s25, [#allocation3], 128, 128, 8
    $region5: #{tpu_custom_call.1} parent=1 // pred_fallthru
      _
    // Predicated region
    $region6: #{tpu_custom_call.1} parent=1 // pred_check
      _
    $region7: #{tpu_custom_call.1} parent=1 // pred_check_branch
      %32 = sbr.rel (0) target = $region9
    $region8: #{tpu_custom_call.1} parent=1 // pred_region
      %s33 = sadd.s32 0, 0
      %p34 = scmp.lt.s32.totalorder %s33, 0
      %s35 = scalar_select %p34, %s33, 0
      %s36 = smul.u32 2, %s35
      %s38 = ssub.s32 256, 256
      %39 = vsyncadd [#allocation6], %s38
      %s40 = smul.addr %s36, 128
      %s41 = scalar_lea.hbm %s1, %s40
      %s42 = sshll.u32 [#allocation5], 4
      %s43 = int_to_ptr.vmem [resolvable:$true] %s42
      %48 = dma.hbm_to_vmem [thread:$0]  %s41, 256, %s43, [#allocation6], 128, 128, 8
    $region9: #{tpu_custom_call.1} parent=1 // pred_fallthru
      _
    // Predicated region
    $region10: #{tpu_custom_call.1} parent=1 // pred_check
      _
    $region11: #{tpu_custom_call.1} parent=1 // pred_check_branch
      %50 = sbr.rel (0) target = $region13
    $region12: #{tpu_custom_call.1} parent=1 // pred_region
      %51 = dma.done [#allocation3], 256
    $region13: #{tpu_custom_call.1} parent=1 // pred_fallthru
      _
    // Predicated region
    $region14: #{tpu_custom_call.1} parent=1 // pred_check
      _
    $region15: #{tpu_custom_call.1} parent=1 // pred_check_branch
      %53 = sbr.rel (0) target = $region17
    $region16: #{tpu_custom_call.1} parent=1 // pred_region
      %54 = dma.done [#allocation6], 256
    $region17: #{tpu_custom_call.1} parent=1 // pred_fallthru
      _
    %s55 = sadd.s32 0, 0
    %p56 = scmp.lt.s32.totalorder %s55, 0
    %s57 = scalar_select %p56, %s55, 0
    %s58 = smul.u32 2, %s57
    %s59 = sadd.s32 0, 0
    %p60 = scmp.lt.s32.totalorder %s59, 0
    %s61 = scalar_select %p60, %s59, 0
    %s62 = smul.u32 2, %s61
    %p63 = scmp.eq.s32.totalorder 0, 0
    // Predicated region
    $region18: #{tpu_custom_call.1} parent=1 // pred_check
      %p64 = pneg %p63
    $region19: #{tpu_custom_call.1} parent=1 // pred_check_branch
      %66 = sbr.rel (%p64) target = $region21
    $region20: #{tpu_custom_call.1} parent=1 // pred_region
      %67 = vst [vmem:[#allocation7] sm:$0xff] 0.0
      %68 = vst [vmem:[#allocation8] sm:$0xff] 0.0
    $region21: #{tpu_custom_call.1} parent=1 // pred_fallthru
      _
    %s69 = sadd.s32 0, 0
    %s70 = smul.u32 %s69, 16
    %s71 = ssub.s32 16, %s70
    %p72 = scmp.gt.s32.totalorder %s71, 0
    %s73 = scalar_select %p72, %s71, 0
    %p74 = scmp.lt.s32.totalorder %s73, 16
    %s75 = scalar_select %p74, %s73, 16
    %p76 = scmp.eq.s32.totalorder %s75, 16
    // Predicated region
    $region22: #{tpu_custom_call.1} parent=1 // pred_check
      %p77 = pneg %p76
    $region23: #{tpu_custom_call.1} parent=1 // pred_check_branch
      %79 = sbr.rel (%p77) target = $region25
    $region24: #{tpu_custom_call.1} parent=1 // pred_region
      %v80 = vld [vmem:[#allocation2] sm:$0xff]
      %v81 = vld [vmem:[#allocation2 + $0x8] sm:$0xff]
      %v82 = vld [vmem:[#allocation5] sm:$0xff]
      %v83 = vld [vmem:[#allocation5 + $0x8] sm:$0xff]
      %v84 = vmul.f32 %v80, %v82
      %v85 = vmul.f32 %v81, %v83
      %v86 = vadd.f32 %v84, %v85
      %v87 = vadd.f32 %v80, %v82
      %v88 = vadd.f32 %v81, %v83
      %v89 = vadd.f32 %v87, %v88
      %v90 = vadd.f32 %v86, 0.0
      %v91 = vadd.f32 %v89, 0.0
      %v92 = vld [vmem:[#allocation7] sm:$0xff]
      %v93 = vadd.f32 %v92, %v90
      %94 = vst [vmem:[#allocation7] sm:$0xff] %v93
      %v95 = vld [vmem:[#allocation8] sm:$0xff]
      %v96 = vadd.f32 %v95, %v91
      %97 = vst [vmem:[#allocation8] sm:$0xff] %v96
    $region25: #{tpu_custom_call.1} parent=1 // pred_fallthru
      _
    %p98 = scmp.ne.s32.totalorder %s75, 16
    // Predicated region
    $region26: #{tpu_custom_call.1} parent=1 // pred_check
      %p99 = pneg %p98
    $region27: #{tpu_custom_call.1} parent=1 // pred_check_branch
      %101 = sbr.rel (%p99) target = $region29
    $region28: #{tpu_custom_call.1} parent=1 // pred_region
      %v102 = vlaneseq
      %v103 = vshrl.u32 %v102, 7
      %v104 = vadd.s32 %v103, 8
      %v105 = vld [vmem:[#allocation2] sm:$0xff]
      %v106 = vld [vmem:[#allocation2 + $0x8] sm:$0xff]
      %v107 = vld [vmem:[#allocation5] sm:$0xff]
      %v108 = vld [vmem:[#allocation5 + $0x8] sm:$0xff]
      %v109 = vstv %s75
      %vm110 = vcmp.lt.s32.totalorder %v103, %v109
      %vm111 = vcmp.lt.s32.totalorder %v104, %v109
      %v112 = vsel %vm110, %v105, 0.0
      %v113 = vsel %vm111, %v106, 0.0
      %v114 = vsel %vm110, %v107, 0.0
      %v115 = vsel %vm111, %v108, 0.0
      %v116 = vmul.f32 %v112, %v114
      %v117 = vmul.f32 %v113, %v115
      %v118 = vadd.f32 %v116, %v117
      %v119 = vadd.f32 %v112, %v114
      %v120 = vadd.f32 %v113, %v115
      %v121 = vadd.f32 %v119, %v120
      %v122 = vadd.f32 %v118, 0.0
      %v123 = vadd.f32 %v121, 0.0
      %v124 = vld [vmem:[#allocation7] sm:$0xff]
      %v125 = vadd.f32 %v124, %v122
      %126 = vst [vmem:[#allocation7] sm:$0xff] %v125
      %v127 = vld [vmem:[#allocation8] sm:$0xff]
      %v128 = vadd.f32 %v127, %v123
      %129 = vst [vmem:[#allocation8] sm:$0xff] %v128
    $region29: #{tpu_custom_call.1} parent=1 // pred_fallthru
      _
    // Predicated region
    $region30: #{tpu_custom_call.1} parent=1 // pred_check
      _
    $region31: #{tpu_custom_call.1} parent=1 // pred_check_branch
      %131 = sbr.rel (0) target = $region33
    $region32: #{tpu_custom_call.1} parent=1 // pred_region
      %s133 = ssub.s32 128, 128
      %134 = vsyncadd [#allocation4], %s133
      %s136 = sshll.u32 [#allocation7], 4
      %s137 = int_to_ptr.vmem [resolvable:$true] %s136
      %139 = dma.vmem_to_hbm [thread:$0]  %s137, 128, %s2, [#allocation4]
    $region33: #{tpu_custom_call.1} parent=1 // pred_fallthru
      _
    // Predicated region
    $region34: #{tpu_custom_call.1} parent=1 // pred_check
      _
    $region35: #{tpu_custom_call.1} parent=1 // pred_check_branch
      %141 = sbr.rel (0) target = $region37
    $region36: #{tpu_custom_call.1} parent=1 // pred_region
      %s143 = ssub.s32 128, 128
      %144 = vsyncadd [#allocation9], %s143
      %s146 = sshll.u32 [#allocation8], 4
      %s147 = int_to_ptr.vmem [resolvable:$true] %s146
      %149 = dma.vmem_to_hbm [thread:$0]  %s147, 128, %s3, [#allocation9]
    $region37: #{tpu_custom_call.1} parent=1 // pred_fallthru
      _
    // Predicated region
    $region38: #{tpu_custom_call.1} parent=1 // pred_check
      _
    $region39: #{tpu_custom_call.1} parent=1 // pred_check_branch
      %151 = sbr.rel (0) target = $region41
    $region40: #{tpu_custom_call.1} parent=1 // pred_region
      %152 = dma.done [#allocation4], 128
    $region41: #{tpu_custom_call.1} parent=1 // pred_fallthru
      _
    // Predicated region
    $region42: #{tpu_custom_call.1} parent=1 // pred_check
      _
    $region43: #{tpu_custom_call.1} parent=1 // pred_check_branch
      %154 = sbr.rel (0) target = $region45
    $region44: #{tpu_custom_call.1} parent=1 // pred_region
      %155 = dma.done [#allocation9], 128
    $region45: #{tpu_custom_call.1} parent=1 // pred_fallthru
      _
    %156 = vsyncpa [#allocation3], 1
    %157 = vsyncpa [#allocation6], 1
    %158 = vsyncpa [#allocation4], 1
    %159 = vsyncpa [#allocation9], 1

</llo_original>
